<compile_context>
chip_gen: v7x
topology: tpu7x:2x2x1
jax: 0.10.0
libtpu: 0.0.40
codegen_flags: <defaults>
</compile_context>

<pallas_src>
import functools

import jax
import jax.numpy as jnp
from jax.experimental import pallas as pl
from jax.experimental.pallas import tpu as pltpu


def _pick_tile_h(H, W):
    """Smallest H-tile dividing H whose flattened spatial extent (tile_h*W) is a
    multiple of 128 lanes and reasonably sized; falls back to the full height."""
    lane_ok = [d for d in range(1, H + 1) if H % d == 0 and (d * W) % 128 == 0]
    if not lane_ok:
        return H
    for d in lane_ok:
        if d * W >= 512:
            return d
    return lane_ok[0]


def _conv_kernel(x_ref, w_ref, b_ref, o_ref, xf_ref, col_ref, *,
                 KH, KW, th, H, W, Cin, pw, LWP):
    """One (batch, h-tile) grid step.

    x_ref   : (1, Cin, H*W)      full flattened image of this batch element (NCHW order)
    w_ref   : (Cout, KH*KW*Cin)  weight-normalized weights, K ordered (kh, kw, cin)
    b_ref   : (Cout, 1)          bias
    o_ref   : (1, Cout, th*W)    lane-dense output tile (flattened spatial)
    xf_ref  : (Cin, L)           scratch: [ (KH-1)*W+pw zeros | x flat | trailing zeros ]
    col_ref : (KH*KW*Cin, th*W)  scratch: im2col block for the fused matmul
    """
    t = pl.program_id(1)
    HW = H * W
    TW = th * W
    pad_lo = (KH - 1) * W + pw          # flat length of the ZeroPad2d top rows (+left pad)

    # ---- 1) zero-padded, spatially-flattened image in VMEM scratch --------------------
    xf_ref[...] = jnp.zeros_like(xf_ref)
    xf_ref[:, pad_lo:pad_lo + HW] = x_ref[0].astype(xf_ref.dtype)

    # flat offset of this h-tile's first output pixel (multiple of 128 by construction)
    base = t * TW
    if TW % 128 == 0:
        base = pl.multiple_of(base, 128)

    # one lane-aligned window covering every shifted tap view of this tile
    window = xf_ref[:, pl.ds(base, LWP)]                       # (Cin, LWP)

    # column-within-row of every output lane in the tile (static)
    col_in_row = jax.lax.broadcasted_iota(jnp.int32, (1, TW), 1) % W

    # ---- 2) im2col via static lane shifts (+ masks for the W zero-pad columns) --------
    for kw in range(KW):
        d = kw - pw
        if d == 0:
            valid = None                                       # center tap: always valid
        else:
            c = col_in_row + d
            valid = (c >= 0) & (c < W)
        for kh in range(KH):
            off = kh * W + kw                                  # static shift per tap
            slab = pltpu.roll(window, shift=(LWP - off) % LWP, axis=1)[:, :TW]
            if valid is not None:
                slab = jnp.where(valid, slab, 0.0)
            tap = kh * KW + kw
            col_ref[tap * Cin:(tap + 1) * Cin, :] = slab

    # ---- 3) single fused MXU matmul, K = KH*KW*Cin; lane-dense store -------------------
    out = jnp.dot(w_ref[...], col_ref[...], preferred_element_type=jnp.float32)
    out = out + b_ref[...]                                     # (Cout, 1) broadcast
    o_ref[0] = out.astype(o_ref.dtype)


def down_shifted_conv2d_forward(x, v, g, bias, *, filter_size=(2, 3),
                                shift_output_down=False):
    """Forward pass matching the PyTorch module (norm='weight_norm', stride=(1,1)).

    x    : (N, Cin, H, W)
    v    : (Cout, Cin, KH, KW)   weight_norm direction parameter
    g    : (Cout,)               weight_norm magnitude parameter
    bias : (Cout,)
    """
    N, Cin, H, W = x.shape
    Cout = v.shape[0]
    KH, KW = filter_size
    # TODO(synk): even filter widths give W_out != W; the flat-shift im2col assumes odd KW.
    assert KW % 2 == 1, "even filter widths not supported"
    pw = (KW - 1) // 2
    HW = H * W
    K = KH * KW * Cin

    # ---- weight_norm (PyTorch wn default dim=0): w = g * v / ||v||_{1,2,3} (param glue) --
    v32 = v.astype(jnp.float32)
    v_norm = jnp.sqrt(jnp.sum(v32 * v32, axis=(1, 2, 3), keepdims=True))
    w = g.astype(jnp.float32)[:, None, None, None] * v32 / v_norm       # (Cout,Cin,KH,KW)
    # 2-D MXU operand; K ordered (kh, kw, cin) to match the kernel's im2col rows
    w2 = jnp.transpose(w, (0, 2, 3, 1)).reshape(Cout, K)
    b2 = bias.astype(jnp.float32).reshape(Cout, 1)

    # ---- tiling ------------------------------------------------------------------------
    th = _pick_tile_h(H, W)
    n_t = H // th
    TW = th * W
    pad_lo = (KH - 1) * W + pw
    LW = TW + pad_lo + pw                      # lanes needed per tile window
    LWP = -(-LW // 128) * 128                  # window length, rounded to full lane tiles
    L_alloc = HW - TW + LWP                    # scratch length (last tile's window fits)

    x_flat = x.reshape(N, Cin, HW)             # contiguous -> free reshape (no HBM pass)

    kernel = functools.partial(_conv_kernel, KH=KH, KW=KW, th=th, H=H, W=W,
                               Cin=Cin, pw=pw, LWP=LWP)

    out_flat = pl.pallas_call(
        kernel,
        out_shape=jax.ShapeDtypeStruct((N, Cout, HW), x.dtype),
        grid_spec=pltpu.PrefetchScalarGridSpec(
            num_scalar_prefetch=0,
            grid=(N, n_t),
            in_specs=[
                pl.BlockSpec((1, Cin, HW), lambda n, t: (n, 0, 0)),
                pl.BlockSpec((Cout, K), lambda n, t: (0, 0)),
                pl.BlockSpec((Cout, 1), lambda n, t: (0, 0)),
            ],
            out_specs=pl.BlockSpec((1, Cout, TW), lambda n, t: (n, 0, t)),
            scratch_shapes=[
                pltpu.VMEM((Cin, L_alloc), jnp.float32),   # zero-padded flat image
                pltpu.VMEM((K, TW), jnp.float32),          # im2col block
            ],
        ),
        compiler_params=pltpu.CompilerParams(
            dimension_semantics=("parallel", "parallel")),
    )(x_flat, w2, b2)

    out = out_flat.reshape(N, Cout, H, W)      # contiguous -> free reshape

    if shift_output_down:
        # down_shift: drop last row, pad one zero row on top (cheap wrapper glue).
        out = jnp.pad(out, ((0, 0), (0, 0), (1, 0), (0, 0)))[:, :, :-1, :]
    return out


def _reference_forward(x, v, g, bias, *, filter_size=(2, 3), shift_output_down=False):
    """Plain-JAX reference of the PyTorch module, for correctness checking."""
    KH, KW = filter_size
    pw = (KW - 1) // 2
    v32 = v.astype(jnp.float32)
    v_norm = jnp.sqrt(jnp.sum(v32 * v32, axis=(1, 2, 3), keepdims=True))
    w = g.astype(jnp.float32)[:, None, None, None] * v32 / v_norm
    xp = jnp.pad(x.astype(jnp.float32), ((0, 0), (0, 0), (KH - 1, 0), (pw, pw)))
    out = jax.lax.conv_general_dilated(
        xp, w, window_strides=(1, 1), padding="VALID",
        dimension_numbers=("NCHW", "OIHW", "NCHW"))
    out = out + bias.astype(jnp.float32)[None, :, None, None]
    if shift_output_down:
        out = jnp.pad(out, ((0, 0), (0, 0), (1, 0), (0, 0)))[:, :, :-1, :]
    return out


if __name__ == "__main__":
    # Small shapes consistent with the module: batch=2, Cin=4, Cout=8, H=W=16, kernel (2,3).
    N, Cin, Cout, H, W = 2, 4, 8, 16, 16
    KH, KW = 2, 3

    key = jax.random.PRNGKey(0)
    kx, kv, kg, kb = jax.random.split(key, 4)

    x = jax.random.normal(kx, (N, Cin, H, W), dtype=jnp.float32)
    v = jax.random.normal(kv, (Cout, Cin, KH, KW), dtype=jnp.float32) * 0.1
    # weight_norm default initializes g = ||v|| per output channel; perturb slightly.
    g = jnp.sqrt(jnp.sum(v ** 2, axis=(1, 2, 3))) * (
        1.0 + 0.01 * jax.random.normal(kg, (Cout,), dtype=jnp.float32))
    bias = jax.random.normal(kb, (Cout,), dtype=jnp.float32) * 0.05

    out = down_shifted_conv2d_forward(x, v, g, bias, filter_size=(KH, KW),
                                      shift_output_down=False)
    jax.block_until_ready(out)
    assert out.shape == (N, Cout, H, W), out.shape

    ref = _reference_forward(x, v, g, bias, filter_size=(KH, KW),
                             shift_output_down=False)
    err = float(jnp.max(jnp.abs(out - ref)))
    assert err < 1e-3, f"max |err| = {err}"

    # also exercise the optional down_shift path
    out_ds = down_shifted_conv2d_forward(x, v, g, bias, filter_size=(KH, KW),
                                         shift_output_down=True)
    jax.block_until_ready(out_ds)
    assert out_ds.shape == (N, Cout, H, W)

    print("KERNEL_OK")
</pallas_src>

<mosaic_0001>
module attributes {stable_mosaic.version = 11 : i64} {
  func.func @_conv_kernel(%arg0: i32, %arg1: i32, %arg2: memref<1x4x256xf32, #tpu.memory_space<vmem>>, %arg3: memref<8x24xf32, #tpu.memory_space<vmem>>, %arg4: memref<8x1xf32, #tpu.memory_space<vmem>>, %arg5: memref<1x8x128xf32, #tpu.memory_space<vmem>>, %arg6: memref<4x384xf32, #tpu.memory_space<vmem>>, %arg7: memref<24x128xf32, #tpu.memory_space<vmem>>) attributes {dimension_semantics = [#tpu.dimension_semantics<parallel>, #tpu.dimension_semantics<parallel>], iteration_bounds = array<i64: 2, 2>, scalar_prefetch = 0 : i64, scratch_operands = 2 : i64, tpu.core_type = #tpu.core_type<tc>, window_params = [{transform_indices = @transform_0, window_bounds = array<i64: 1, 4, 256>}, {pipeline_mode = #tpu.pipeline_mode<synchronous>, transform_indices = @transform_1, window_bounds = array<i64: 8, 24>}, {pipeline_mode = #tpu.pipeline_mode<synchronous>, transform_indices = @transform_2, window_bounds = array<i64: 8, 1>}, {transform_indices = @transform_3, window_bounds = array<i64: 1, 8, 128>}]} {
    %cst = arith.constant 0.000000e+00 : f32
    %0 = vector.broadcast %cst : f32 to vector<4x384xf32>
    %c0 = arith.constant 0 : index
    %c0_0 = arith.constant 0 : index
    %1 = vector.load %arg6[%c0, %c0_0] : memref<4x384xf32, #tpu.memory_space<vmem>>, vector<4x384xf32>
    tpu.vector_store %arg6[%c0, %c0_0], %0 {strides = array<i32>} : memref<4x384xf32, #tpu.memory_space<vmem>>, vector<4x384xf32>,
    %c0_1 = arith.constant 0 : index
    %c0_2 = arith.constant 0 : index
    %c0_3 = arith.constant 0 : index
    %2 = vector.load %arg2[%c0_1, %c0_2, %c0_3] : memref<1x4x256xf32, #tpu.memory_space<vmem>>, vector<1x4x256xf32>
    %3 = vector.shape_cast %2 : vector<1x4x256xf32> to vector<4x256xf32>
    %c0_4 = arith.constant 0 : index
    %c17 = arith.constant 17 : index
    %4 = vector.load %arg6[%c0_4, %c17] : memref<4x384xf32, #tpu.memory_space<vmem>>, vector<4x256xf32>
    tpu.vector_store %arg6[%c0_4, %c17], %3 {strides = array<i32>} : memref<4x384xf32, #tpu.memory_space<vmem>>, vector<4x256xf32>,
    %c128_i32 = arith.constant 128 : i32
    %5 = arith.muli %arg1, %c128_i32 : i32
    %6 = tpu.assume_multiple %5, 128 : i32
    %c0_5 = arith.constant 0 : index
    %7 = arith.index_cast %6 : i32 to index
    %8 = vector.load %arg6[%c0_5, %7] : memref<4x384xf32, #tpu.memory_space<vmem>>, vector<4x256xf32>
    %9 = tpu.iota {dimensions = array<i32: 1>} : vector<1x128xi32>
    %c16_i32 = arith.constant 16 : i32
    %c0_i32 = arith.constant 0 : i32
    %10 = arith.cmpi eq, %c16_i32, %c0_i32 : i32
    %c1_i32 = arith.constant 1 : i32
    %11 = arith.select %10, %c1_i32, %c16_i32 : i32
    %12 = vector.broadcast %11 : i32 to vector<1x128xi32>
    %13 = arith.remsi %9, %12 : vector<1x128xi32>
    %c0_i32_6 = arith.constant 0 : i32
    %14 = vector.broadcast %c0_i32_6 : i32 to vector<1x128xi32>
    %15 = arith.cmpi ne, %13, %14 : vector<1x128xi32>
    %c0_i32_7 = arith.constant 0 : i32
    %16 = vector.broadcast %c0_i32_7 : i32 to vector<1x128xi32>
    %17 = arith.cmpi slt, %13, %16 : vector<1x128xi32>
    %c0_i32_8 = arith.constant 0 : i32
    %18 = arith.cmpi slt, %11, %c0_i32_8 : i32
    %19 = vector.broadcast %18 : i1 to vector<1x128xi1>
    %20 = vector.broadcast %19 : vector<1x128xi1> to vector<1x128xi1>
    %21 = arith.xori %17, %20 : vector<1x128xi1>
    %22 = arith.andi %21, %15 : vector<1x128xi1>
    %23 = vector.broadcast %11 : i32 to vector<1x128xi32>
    %24 = arith.addi %13, %23 : vector<1x128xi32>
    %25 = arith.select %22, %24, %13 : vector<1x128xi1>, vector<1x128xi32>
    %c-1_i32 = arith.constant -1 : i32
    %26 = vector.broadcast %c-1_i32 : i32 to vector<1x128xi32>
    %27 = arith.addi %25, %26 : vector<1x128xi32>
    %c0_i32_9 = arith.constant 0 : i32
    %28 = vector.broadcast %c0_i32_9 : i32 to vector<1x128xi32>
    %29 = arith.cmpi sge, %27, %28 : vector<1x128xi32>
    %c16_i32_10 = arith.constant 16 : i32
    %30 = vector.broadcast %c16_i32_10 : i32 to vector<1x128xi32>
    %31 = arith.cmpi slt, %27, %30 : vector<1x128xi32>
    %32 = arith.andi %29, %31 : vector<1x128xi1>
    %c0_i32_11 = arith.constant 0 : i32
    %33 = tpu.dynamic_rotate %8 by %c0_i32_11 dim 1 : vector<4x256xf32>, i32 -> vector<4x256xf32>
    %34 = vector.extract_strided_slice %33 {offsets = [0, 0], sizes = [4, 128], strides = [1, 1]} : vector<4x256xf32> to vector<4x128xf32>
    %cst_12 = arith.constant 0.000000e+00 : f32
    %35 = vector.shape_cast %32 : vector<1x128xi1> to vector<1x128xi1>
    %36 = vector.broadcast %35 : vector<1x128xi1> to vector<4x128xi1>
    %37 = vector.broadcast %cst_12 : f32 to vector<4x128xf32>
    %38 = arith.select %36, %34, %37 : vector<4x128xi1>, vector<4x128xf32>
    %c0_13 = arith.constant 0 : index
    %c0_14 = arith.constant 0 : index
    %39 = vector.load %arg7[%c0_13, %c0_14] : memref<24x128xf32, #tpu.memory_space<vmem>>, vector<4x128xf32>
    tpu.vector_store %arg7[%c0_13, %c0_14], %38 {strides = array<i32>} : memref<24x128xf32, #tpu.memory_space<vmem>>, vector<4x128xf32>,
    %c240_i32 = arith.constant 240 : i32
    %40 = tpu.dynamic_rotate %8 by %c240_i32 dim 1 : vector<4x256xf32>, i32 -> vector<4x256xf32>
    %41 = vector.extract_strided_slice %40 {offsets = [0, 0], sizes = [4, 128], strides = [1, 1]} : vector<4x256xf32> to vector<4x128xf32>
    %cst_15 = arith.constant 0.000000e+00 : f32
    %42 = vector.shape_cast %32 : vector<1x128xi1> to vector<1x128xi1>
    %43 = vector.broadcast %42 : vector<1x128xi1> to vector<4x128xi1>
    %44 = vector.broadcast %cst_15 : f32 to vector<4x128xf32>
    %45 = arith.select %43, %41, %44 : vector<4x128xi1>, vector<4x128xf32>
    %c12 = arith.constant 12 : index
    %c0_16 = arith.constant 0 : index
    %46 = vector.load %arg7[%c12, %c0_16] : memref<24x128xf32, #tpu.memory_space<vmem>>, vector<4x128xf32>
    tpu.vector_store %arg7[%c12, %c0_16], %45 {strides = array<i32>} : memref<24x128xf32, #tpu.memory_space<vmem>>, vector<4x128xf32>,
    %c255_i32 = arith.constant 255 : i32
    %47 = tpu.dynamic_rotate %8 by %c255_i32 dim 1 : vector<4x256xf32>, i32 -> vector<4x256xf32>
    %48 = vector.extract_strided_slice %47 {offsets = [0, 0], sizes = [4, 128], strides = [1, 1]} : vector<4x256xf32> to vector<4x128xf32>
    %c4 = arith.constant 4 : index
    %c0_17 = arith.constant 0 : index
    %49 = vector.load %arg7[%c4, %c0_17] : memref<24x128xf32, #tpu.memory_space<vmem>>, vector<4x128xf32>
    tpu.vector_store %arg7[%c4, %c0_17], %48 {strides = array<i32>} : memref<24x128xf32, #tpu.memory_space<vmem>>, vector<4x128xf32>,
    %c239_i32 = arith.constant 239 : i32
    %50 = tpu.dynamic_rotate %8 by %c239_i32 dim 1 : vector<4x256xf32>, i32 -> vector<4x256xf32>
    %51 = vector.extract_strided_slice %50 {offsets = [0, 0], sizes = [4, 128], strides = [1, 1]} : vector<4x256xf32> to vector<4x128xf32>
    %c16 = arith.constant 16 : index
    %c0_18 = arith.constant 0 : index
    %52 = vector.load %arg7[%c16, %c0_18] : memref<24x128xf32, #tpu.memory_space<vmem>>, vector<4x128xf32>
    tpu.vector_store %arg7[%c16, %c0_18], %51 {strides = array<i32>} : memref<24x128xf32, #tpu.memory_space<vmem>>, vector<4x128xf32>,
    %c1_i32_19 = arith.constant 1 : i32
    %53 = vector.broadcast %c1_i32_19 : i32 to vector<1x128xi32>
    %54 = arith.addi %25, %53 : vector<1x128xi32>
    %c0_i32_20 = arith.constant 0 : i32
    %55 = vector.broadcast %c0_i32_20 : i32 to vector<1x128xi32>
    %56 = arith.cmpi sge, %54, %55 : vector<1x128xi32>
    %c16_i32_21 = arith.constant 16 : i32
    %57 = vector.broadcast %c16_i32_21 : i32 to vector<1x128xi32>
    %58 = arith.cmpi slt, %54, %57 : vector<1x128xi32>
    %59 = arith.andi %56, %58 : vector<1x128xi1>
    %c254_i32 = arith.constant 254 : i32
    %60 = tpu.dynamic_rotate %8 by %c254_i32 dim 1 : vector<4x256xf32>, i32 -> vector<4x256xf32>
    %61 = vector.extract_strided_slice %60 {offsets = [0, 0], sizes = [4, 128], strides = [1, 1]} : vector<4x256xf32> to vector<4x128xf32>
    %cst_22 = arith.constant 0.000000e+00 : f32
    %62 = vector.shape_cast %59 : vector<1x128xi1> to vector<1x128xi1>
    %63 = vector.broadcast %62 : vector<1x128xi1> to vector<4x128xi1>
    %64 = vector.broadcast %cst_22 : f32 to vector<4x128xf32>
    %65 = arith.select %63, %61, %64 : vector<4x128xi1>, vector<4x128xf32>
    %c8 = arith.constant 8 : index
    %c0_23 = arith.constant 0 : index
    %66 = vector.load %arg7[%c8, %c0_23] : memref<24x128xf32, #tpu.memory_space<vmem>>, vector<4x128xf32>
    tpu.vector_store %arg7[%c8, %c0_23], %65 {strides = array<i32>} : memref<24x128xf32, #tpu.memory_space<vmem>>, vector<4x128xf32>,
    %c238_i32 = arith.constant 238 : i32
    %67 = tpu.dynamic_rotate %8 by %c238_i32 dim 1 : vector<4x256xf32>, i32 -> vector<4x256xf32>
    %68 = vector.extract_strided_slice %67 {offsets = [0, 0], sizes = [4, 128], strides = [1, 1]} : vector<4x256xf32> to vector<4x128xf32>
    %cst_24 = arith.constant 0.000000e+00 : f32
    %69 = vector.shape_cast %59 : vector<1x128xi1> to vector<1x128xi1>
    %70 = vector.broadcast %69 : vector<1x128xi1> to vector<4x128xi1>
    %71 = vector.broadcast %cst_24 : f32 to vector<4x128xf32>
    %72 = arith.select %70, %68, %71 : vector<4x128xi1>, vector<4x128xf32>
    %c20 = arith.constant 20 : index
    %c0_25 = arith.constant 0 : index
    %73 = vector.load %arg7[%c20, %c0_25] : memref<24x128xf32, #tpu.memory_space<vmem>>, vector<4x128xf32>
    tpu.vector_store %arg7[%c20, %c0_25], %72 {strides = array<i32>} : memref<24x128xf32, #tpu.memory_space<vmem>>, vector<4x128xf32>,
    %c0_26 = arith.constant 0 : index
    %c0_27 = arith.constant 0 : index
    %74 = vector.load %arg3[%c0_26, %c0_27] : memref<8x24xf32, #tpu.memory_space<vmem>>, vector<8x24xf32>
    %c0_28 = arith.constant 0 : index
    %c0_29 = arith.constant 0 : index
    %75 = vector.load %arg7[%c0_28, %c0_29] : memref<24x128xf32, #tpu.memory_space<vmem>>, vector<24x128xf32>
    %cst_30 = arith.constant dense<0.000000e+00> : vector<8x128xf32>
    %76 = tpu.matmul %74, %75, %cst_30 {dimension_numbers = #tpu.dot_dimension_numbers<[1], [0], [0], [1], [0, 0, 1, 1], [], []>} : vector<8x24xf32>, vector<24x128xf32>, vector<8x128xf32> -> vector<8x128xf32>
    %c0_31 = arith.constant 0 : index
    %c0_32 = arith.constant 0 : index
    %77 = vector.load %arg4[%c0_31, %c0_32] : memref<8x1xf32, #tpu.memory_space<vmem>>, vector<8x1xf32>
    %78 = vector.broadcast %77 : vector<8x1xf32> to vector<8x128xf32>
    %79 = arith.addf %76, %78 : vector<8x128xf32>
    %c0_33 = arith.constant 0 : index
    %c0_34 = arith.constant 0 : index
    %c0_35 = arith.constant 0 : index
    %80 = vector.load %arg5[%c0_33, %c0_34, %c0_35] : memref<1x8x128xf32, #tpu.memory_space<vmem>>, vector<1x8x128xf32>
    %81 = vector.shape_cast %80 : vector<1x8x128xf32> to vector<8x128xf32>
    %82 = vector.shape_cast %79 : vector<8x128xf32> to vector<1x8x128xf32>
    tpu.vector_store %arg5[%c0_33, %c0_34, %c0_35], %82 {strides = array<i32>} : memref<1x8x128xf32, #tpu.memory_space<vmem>>, vector<1x8x128xf32>,
    return
  }
  func.func @transform_0(%arg0: i32, %arg1: i32) -> (i32, i32, i32) {
    %c0_i32 = arith.constant 0 : i32
    %c0_i32_0 = arith.constant 0 : i32
    %c0_i32_1 = arith.constant 0 : i32
    return %arg0, %c0_i32, %c0_i32_0 : i32, i32, i32
  }
  func.func @transform_1(%arg0: i32, %arg1: i32) -> (i32, i32) {
    %c0_i32 = arith.constant 0 : i32
    %c0_i32_0 = arith.constant 0 : i32
    %c0_i32_1 = arith.constant 0 : i32
    return %c0_i32, %c0_i32_0 : i32, i32
  }
  func.func @transform_2(%arg0: i32, %arg1: i32) -> (i32, i32) {
    %c0_i32 = arith.constant 0 : i32
    %c0_i32_0 = arith.constant 0 : i32
    %c0_i32_1 = arith.constant 0 : i32
    return %c0_i32, %c0_i32_0 : i32, i32
  }
  func.func @transform_3(%arg0: i32, %arg1: i32) -> (i32, i32, i32) {
    %c0_i32 = arith.constant 0 : i32
    %c0_i32_0 = arith.constant 0 : i32
    return %arg0, %c0_i32, %arg1 : i32, i32, i32
  }
}

</mosaic_0001>

<llo_original>
// kernel: tpu_custom_call.1
$region0: #{tpu_custom_call.1}
  #allocation0 [shape = 'u32[]', space=smem, size = 0x4, offset = 0x4, fixed_abs, tag = 'smem constant byte address 0x4 - core index']
  #allocation1 [shape = 'u32[144,128]{1,0:T(1,128)}', space=vmem, size = 0x12000, scoped, tag = 'internal scratch']
  #allocation2 [shape = 'f32[4,384]{1,0:T(4,128)}', space=vmem, size = 0x1800, scoped, tag = 'scratch operand']
  #allocation3 [shape = 'f32[24,128]{1,0:T(8,128)}', space=vmem, size = 0x3000, scoped, tag = 'scratch operand']
  %s0 = inlined_call_operand.hbm [shape: f32[2,4,256], index: 0, kind: input, shape index: {}]
  %s1 = inlined_call_operand.vmem [shape: f32[8,24], index: 1, kind: input, shape index: {}]
  %s2 = inlined_call_operand.vmem [shape: f32[8,1], index: 2, kind: input, shape index: {}]
  %s3 = inlined_call_operand.hbm [shape: f32[2,8,256], index: 3, kind: output, shape index: {}]
  %s4 = sld [smem:[#allocation0]]
  $region49: #{tpu_custom_call.1} parent=0
    _
  %s6 = ssub.s32 1, %s4
  %s7 = scalar_select 0, %s6, %s4
  $region1: #{tpu_custom_call.1} parent=0
    #allocation4 [shape = 'u8[8192]{0}', space=vmem, size = 0x2000, scoped, tag = 'input window, operand 0']
    #allocation5 [shape = 's32[2]{0}', space=sflag, size = 0x8, scoped, tag = 'scoped memory for tpu_custom_call.1']
    #allocation6 [shape = 's32[2]{0}', space=sflag, size = 0x8, scoped, tag = 'scoped memory for tpu_custom_call.1']
    #allocation7 [shape = 'u8[8192]{0}', space=vmem, size = 0x2000, scoped, tag = 'output window, operand 0']
    %8 = vsyncpa [#allocation5], 0
    %s9 = scalar_lea.sflag [#allocation5], 1
    %10 = vsyncpa %s9, 0
    %11 = vsyncpa [#allocation6], 0
    %s12 = scalar_lea.sflag [#allocation6], 1
    %13 = vsyncpa %s12, 0
    loop: start=0, step=1, limit=6
    $region2: #{tpu_custom_call.1} parent=1 // loop_pre_header
      _
    $region3: #{tpu_custom_call.1} parent=1 // loop_header
      %s15 = sphi 0, %s19
      %p16 = scmp.ge.s32.totalorder %s15, 6
      %s22 = sphi 0, %s34
      %s23 = sphi 0, %s30
      %s24 = sphi 0, %s22
      %s25 = sphi 0, %s23
      %s26 = sphi 0, %s24
      %s27 = sphi 0, %s25
      %s37 = sphi 0, %s39
      %s40 = sphi 0, %s37
      %s41 = sphi 0, %s40
      %s57 = sphi 0, %s41
      %s61 = sphi 0, %s61
      %s63 = sphi 0, %s61
      %s64 = sphi 0, %s63
      %s78 = sphi 0, %s64
      %s82 = sphi 0, %s82
      %s84 = sphi 0, %s82
      %s85 = sphi 0, %s84
      %s99 = sphi 0, %s85
      %s107 = sphi 0, %s109
      %s110 = sphi 0, %s107
      %s111 = sphi 0, %s110
      %s127 = sphi 0, %s111
    $region4: #{tpu_custom_call.1} parent=1 // loop_header_branch
      %18 = sbr.rel (%p16) target = $region8
    $region5: #{tpu_custom_call.1} parent=1 // loop_body
      %s20 = ssub.s32 %s15, 1
      %s21 = ssub.s32 %s15, 2
      %s28 = sadd.s32 1, %s23
      %p29 = scmp.ge.s32.totalorder %s28, 2
      %s30 = scalar_select %p29, 0, %s28
      %s31 = sadd.s32 1, %s22
      %s32 = scalar_select %p29, %s31, %s22
      %p33 = scmp.ge.s32.totalorder %s32, 2
      %s34 = scalar_select %p33, 0, %s32
      %s35 = ssub.s32 %s22, %s34
      %p36 = scmp.eq.s32.totalorder %s35, 0
      %s38 = sadd.s32 %s37, 1
      %s39 = scalar_select %p36, %s37, %s38
      %p42 = pneg %p36
      %p43 = scmp.eq.s32.totalorder %s15, 3
      %p44 = por %p42, %p43
      %p45 = scmp.ne.s32.totalorder %s37, %s40
      %p46 = scmp.eq.s32.totalorder %s15, 0
      %p47 = por %p45, %p46
      %p48 = scmp.ne.s32.totalorder %s37, %s40
      %p49 = scmp.eq.s32.totalorder %s20, 3
      %p50 = por %p48, %p49
      %p51 = scmp.ne.s32.totalorder %s40, %s41
      %p52 = scmp.eq.s32.totalorder %s20, 0
      %p53 = por %p51, %p52
      %p54 = scmp.ne.s32.totalorder %s40, %s41
      %p55 = scmp.eq.s32.totalorder %s21, 3
      %p56 = por %p54, %p55
      %p58 = scmp.ne.s32.totalorder %s41, %s57
      %p59 = scmp.eq.s32.totalorder %s21, 0
      %p60 = por %p58, %p59
      %s62 = sadd.s32 %s61, 1
      %p65 = scmp.eq.s32.totalorder %s15, 3
      %p66 = scmp.ne.s32.totalorder %s61, %s63
      %p67 = scmp.eq.s32.totalorder %s15, 0
      %p68 = por %p66, %p67
      %p69 = scmp.ne.s32.totalorder %s61, %s63
      %p70 = scmp.eq.s32.totalorder %s20, 3
      %p71 = por %p69, %p70
      %p72 = scmp.ne.s32.totalorder %s63, %s64
      %p73 = scmp.eq.s32.totalorder %s20, 0
      %p74 = por %p72, %p73
      %p75 = scmp.ne.s32.totalorder %s63, %s64
      %p76 = scmp.eq.s32.totalorder %s21, 3
      %p77 = por %p75, %p76
      %p79 = scmp.ne.s32.totalorder %s64, %s78
      %p80 = scmp.eq.s32.totalorder %s21, 0
      %p81 = por %p79, %p80
      %s83 = sadd.s32 %s82, 1
      %p86 = scmp.eq.s32.totalorder %s15, 3
      %p87 = scmp.ne.s32.totalorder %s82, %s84
      %p88 = scmp.eq.s32.totalorder %s15, 0
      %p89 = por %p87, %p88
      %p90 = scmp.ne.s32.totalorder %s82, %s84
      %p91 = scmp.eq.s32.totalorder %s20, 3
      %p92 = por %p90, %p91
      %p93 = scmp.ne.s32.totalorder %s84, %s85
      %p94 = scmp.eq.s32.totalorder %s20, 0
      %p95 = por %p93, %p94
      %p96 = scmp.ne.s32.totalorder %s84, %s85
      %p97 = scmp.eq.s32.totalorder %s21, 3
      %p98 = por %p96, %p97
      %p100 = scmp.ne.s32.totalorder %s85, %s99
      %p101 = scmp.eq.s32.totalorder %s21, 0
      %p102 = por %p100, %p101
      %s103 = ssub.s32 %s22, %s34
      %s104 = ssub.s32 %s23, %s30
      %s105 = sor.u32 %s103, %s104
      %p106 = scmp.eq.s32.totalorder %s105, 0
      %s108 = sadd.s32 %s107, 1
      %s109 = scalar_select %p106, %s107, %s108
      %p112 = pneg %p106
      %p113 = scmp.eq.s32.totalorder %s15, 3
      %p114 = por %p112, %p113
      %p115 = scmp.ne.s32.totalorder %s107, %s110
      %p116 = scmp.eq.s32.totalorder %s15, 0
      %p117 = por %p115, %p116
      %p118 = scmp.ne.s32.totalorder %s107, %s110
      %p119 = scmp.eq.s32.totalorder %s20, 3
      %p120 = por %p118, %p119
      %p121 = scmp.ne.s32.totalorder %s110, %s111
      %p122 = scmp.eq.s32.totalorder %s20, 0
      %p123 = por %p121, %p122
      %p124 = scmp.ne.s32.totalorder %s110, %s111
      %p125 = scmp.eq.s32.totalorder %s21, 3
      %p126 = por %p124, %p125
      %p128 = scmp.ne.s32.totalorder %s111, %s127
      %p129 = scmp.eq.s32.totalorder %s21, 0
      %p130 = por %p128, %p129
      %p131 = scmp.le.s32.totalorder 1, %s15
      %p132 = scmp.lt.s32.totalorder %s15, 5
      %p133 = pnand %p131, %p132
      %p134 = pneg %p133
      // Predicated region
      $region9: #{tpu_custom_call.1} parent=5 // pred_check
        _
      $region10: #{tpu_custom_call.1} parent=5 // pred_check_branch
        %136 = sbr.rel (%p133) target = $region12
      $region11: #{tpu_custom_call.1} parent=5 // pred_region
        %s137 = ssub.s32 %s15, 1
        // Predicated region
        $region13: #{tpu_custom_call.1} parent=11 // pred_check
          %p138 = pneg %p74
        $region14: #{tpu_custom_call.1} parent=11 // pred_check_branch
          %140 = sbr.rel (%p138) target = $region16
        $region15: #{tpu_custom_call.1} parent=11 // pred_region
          _
        $region16: #{tpu_custom_call.1} parent=11 // pred_fallthru
          _
        // Predicated region
        $region17: #{tpu_custom_call.1} parent=11 // pred_check
          %p141 = pneg %p95
        $region18: #{tpu_custom_call.1} parent=11 // pred_check_branch
          %143 = sbr.rel (%p141) target = $region20
        $region19: #{tpu_custom_call.1} parent=11 // pred_region
          _
        $region20: #{tpu_custom_call.1} parent=11 // pred_fallthru
          _
      $region12: #{tpu_custom_call.1} parent=5 // pred_fallthru
        _
      %p144 = scmp.lt.s32.totalorder %s15, 4
      // Predicated region
      $region21: #{tpu_custom_call.1} parent=5 // pred_check
        %p145 = pneg %p144
      $region22: #{tpu_custom_call.1} parent=5 // pred_check_branch
        %147 = sbr.rel (%p145) target = $region24
      $region23: #{tpu_custom_call.1} parent=5 // pred_region
        // Predicated region
        $region25: #{tpu_custom_call.1} parent=23 // pred_check
          %p148 = pneg %p47
        $region26: #{tpu_custom_call.1} parent=23 // pred_check_branch
          %150 = sbr.rel (%p148) target = $region28
        $region27: #{tpu_custom_call.1} parent=23 // pred_region
          %s151 = sand.u32 %s37, 1
          %s152 = scalar_lea.sflag [#allocation5], %s151
          %s153 = sand.u32 %s37, 1
          %s154 = smul.addr %s153, 8
          %s155 = scalar_lea.vmem [#allocation4], %s154
          %s157 = ssub.s32 128, 128
          %158 = vsyncadd %s152, %s157
          %s159 = smul.addr %s22, 2
          %s160 = smul.addr %s159, 64
          %s161 = scalar_lea.hbm %s0, %s160
          %s163 = sshll.u32 %s155, 4
          %s164 = int_to_ptr.vmem [resolvable:$true] %s163
          %166 = dma.hbm_to_vmem [thread:$0]  %s161, 128, %s164, %s152
        $region28: #{tpu_custom_call.1} parent=23 // pred_fallthru
          _
      $region24: #{tpu_custom_call.1} parent=5 // pred_fallthru
        _
      %p167 = scmp.le.s32.totalorder 1, %s15
      %p168 = scmp.lt.s32.totalorder %s15, 5
      %p169 = pnand %p167, %p168
      %p170 = pneg %p169
      // Predicated region
      $region29: #{tpu_custom_call.1} parent=5 // pred_check
        _
      $region30: #{tpu_custom_call.1} parent=5 // pred_check_branch
        %172 = sbr.rel (%p169) target = $region32
      $region31: #{tpu_custom_call.1} parent=5 // pred_region
        %s173 = ssub.s32 %s15, 1
        %s174 = sand.u32 %s40, 1
        %s175 = scalar_lea.sflag [#allocation5], %s174
        %s176 = sand.u32 %s40, 1
        %s177 = smul.addr %s176, 8
        %s178 = scalar_lea.vmem [#allocation4], %s177
        // Predicated region
        $region33: #{tpu_custom_call.1} parent=31 // pred_check
          %p179 = pneg %p53
        $region34: #{tpu_custom_call.1} parent=31 // pred_check_branch
          %181 = sbr.rel (%p179) target = $region36
        $region35: #{tpu_custom_call.1} parent=31 // pred_region
          %182 = dma.done %s175, 128
        $region36: #{tpu_custom_call.1} parent=31 // pred_fallthru
          _
        %s183 = sand.u32 %s40, 1
        %s184 = scalar_lea.sflag [#allocation5], %s183
        %s185 = sand.u32 %s40, 1
        %s186 = smul.addr %s185, 8
        %s187 = scalar_lea.vmem [#allocation4], %s186
        %p188 = pneg %p53
        %p189 = pneg %p50
        %p190 = pneg %p74
        %p191 = pneg %p71
        %p192 = pneg %p95
        %p193 = pneg %p92
        %p194 = pneg %p123
        %p195 = pneg %p120
        %s196 = sand.u32 %s110, 1
        %s197 = scalar_lea.sflag [#allocation6], %s196
        %s198 = sand.u32 %s110, 1
        %s199 = smul.addr %s198, 8
        %s200 = scalar_lea.vmem [#allocation7], %s199
        %201 = vst [vmem:[#allocation2] sm:$0xff] 0.0
        %202 = vst [vmem:[#allocation2 + $0x8] sm:$0xf] 0.0
        %v203 = vld [vmem:[%s178] sm:$0xff]
        %205 = vrot.lane.b32.xlu0 %v203, 17
        %v206 = vpop.permute.xlu0 %205
        %v207 = vrot.slane %v206, 4
        %vm208 = vcmask 138240
        %v209 = vsel %vm208, %v207, %v206
        %vm212 = vcmask 1043592
        %vm213 = vcmask 1047556
        %vm214 = vmor %vm213, %vm212
        %215 = vst.msk [vmem:[#allocation2] sm:$0xff] %vm214, %v209
        %vm216 = vcmask 134144
        %217 = vst.msk [vmem:[#allocation2 + $0x8] sm:$0xf] %vm216, %v207
        %s218 = smul.u32 %s25, 128
        %s219 = sshra.s32 %s218, 7
        %s220 = sand.u32 %s218, 127
        %s221 = smul.addr %s219, 4
        %s222 = scalar_lea.vmem [#allocation2], %s221
        %v223 = vld [vmem:[%s222] sm:$0xff]
        %v224 = vlaneseq
        %v225 = vand.u32 %v224, 127
        %vm226 = vcmp.lt.s32.totalorder %v225, 0
        %v227 = vsub.s32 0, %v225
        %v228 = vsel %vm226, %v227, %v225
        %v229 = vshrl.u32 %v228, 4
        %v230 = vand.u32 %v228, 15
        %v231 = vsub.s32 0, %v230
        %v232 = vsel %vm226, %v231, %v230
        %vm233 = vcmp.ne.s32.totalorder %v232, 0
        %vm234 = vcmp.lt.s32.totalorder %v232, 0
        %vm235 = vmand %vm234, %vm233
        %v236 = vadd.s32 %v232, 16
        %v237 = vsel %vm235, %v236, %v232
        %v238 = vadd.s32 %v237, 4294967295
        %vm239 = vcmp.ge.s32.totalorder %v238, 0
        %vm240 = vcmp.lt.s32.totalorder %v238, 16
        %vm241 = vmand %vm239, %vm240
        %v243 = vsel %vm241, 1, 0
        %vm244 = vcmp.eq.s32.totalorder %v243, 1
        %v245 = vsel %vm244, %v223, 0.0
        %246 = vst [vmem:[#allocation3] sm:$0xf] %v245
        %v247 = vcombine.high %v223, %v223
        %249 = vrot.lane.b32.xlu0 %v223, 112
        %v250 = vpop.permute.xlu0 %249
        %251 = vrot.lane.b32.xlu0 %v247, 112
        %v252 = vpop.permute.xlu0 %251
        %vm253 = vcmp.lt.s32.totalorder %v225, 112
        %v254 = vsel %vm253, %v250, %v252
        %v255 = vsel %vm244, %v254, 0.0
        %256 = vst [vmem:[#allocation3 + $0xc] sm:$0xf] %v255
        %257 = vrot.lane.b32.xlu0 %v223, 127
        %v258 = vpop.permute.xlu0 %257
        %259 = vrot.lane.b32.xlu0 %v247, 127
        %v260 = vpop.permute.xlu0 %259
        %vm261 = vcmp.lt.s32.totalorder %v225, 127
        %v262 = vsel %vm261, %v258, %v260
        %263 = vst [vmem:[#allocation3 + $0x4] sm:$0xf] %v262
        %264 = vrot.lane.b32.xlu0 %v223, 111
        %v265 = vpop.permute.xlu0 %264
        %266 = vrot.lane.b32.xlu0 %v247, 111
        %v267 = vpop.permute.xlu0 %266
        %vm268 = vcmp.lt.s32.totalorder %v225, 111
        %v269 = vsel %vm268, %v265, %v267
        %270 = vst [vmem:[#allocation3 + $0x10] sm:$0xf] %v269
        %v271 = vadd.s32 %v237, 1
        %vm272 = vcmp.ge.s32.totalorder %v271, 0
        %vm273 = vcmp.lt.s32.totalorder %v271, 16
        %vm274 = vmand %vm272, %vm273
        %275 = vrot.lane.b32.xlu0 %v223, 126
        %v276 = vpop.permute.xlu0 %275
        %277 = vrot.lane.b32.xlu0 %v247, 126
        %v278 = vpop.permute.xlu0 %277
        %vm279 = vcmp.lt.s32.totalorder %v225, 126
        %v280 = vsel %vm279, %v276, %v278
        %v281 = vsel %vm274, 1, 0
        %vm282 = vcmp.eq.s32.totalorder %v281, 1
        %v283 = vsel %vm282, %v280, 0.0
        %284 = vst [vmem:[#allocation3 + $0x8] sm:$0xf] %v283
        %285 = vrot.lane.b32.xlu0 %v223, 110
        %v286 = vpop.permute.xlu0 %285
        %287 = vrot.lane.b32.xlu0 %v247, 110
        %v288 = vpop.permute.xlu0 %287
        %vm289 = vcmp.lt.s32.totalorder %v225, 110
        %v290 = vsel %vm289, %v286, %v288
        %v291 = vsel %vm282, %v290, 0.0
        %292 = vst [vmem:[#allocation3 + $0x14] sm:$0xf] %v291
        %v293 = vld [vmem:[%s1] sm:$0xff]
        %v294 = vld [vmem:[#allocation3] sm:$0xff]
        %v295 = vld [vmem:[#allocation3 + $0x8] sm:$0xff]
        %v296 = vld [vmem:[#allocation3 + $0x10] sm:$0xff]
        %v297 = vld [vmem:[%s2] sm:$0xff]
        %299 = vset.pattern.permute.xlu0 0
        %300 = vperm.xlu0 %299, %v297
        %v301 = vpop.permute.xlu0 %300
        %vm303 = vcmask 195584
        %v305 = vsel %vm303, %v293, 0
        %307 = vmatprep.subr.mxu0 0.0
        %308 = vmatpush1.msra.mxu0 %v294
        %309 = vmatprep.subr.mxu0 0.0
        %310 = vmatpush1.msra.mxu0 %v295
        %311 = vmatprep.subr.mxu0 0.0
        %312 = vmatpush1.msra.mxu0 %v296
        %313 = vmatprep.subr.mxu0 0.0
        %314 = vmatpush1.msra.mxu0 0.0
        %315 = vmatprep.subr.mxu0 0.0
        %316 = vmatpush1.msra.mxu0 0.0
        %317 = vmatprep.subr.mxu0 0.0
        %318 = vmatpush1.msra.mxu0 0.0
        %319 = vmatprep.subr.mxu0 0.0
        %320 = vmatpush1.msra.mxu0 0.0
        %321 = vmatprep.subr.mxu0 0.0
        %322 = vmatpush1.msra.mxu0 0.0
        %323 = vmatprep.subr.mxu0 0.0
        %324 = vmatpush1.msra.mxu0 0.0
        %325 = vmatprep.subr.mxu0 0.0
        %326 = vmatpush1.msra.mxu0 0.0
        %327 = vmatprep.subr.mxu0 0.0
        %328 = vmatpush1.msra.mxu0 0.0
        %329 = vmatprep.subr.mxu0 0.0
        %330 = vmatpush1.msra.mxu0 0.0
        %331 = vmatprep.subr.mxu0 0.0
        %332 = vmatpush1.msra.mxu0 0.0
        %333 = vmatprep.subr.mxu0 0.0
        %334 = vmatpush1.msra.mxu0 0.0
        %335 = vmatprep.subr.mxu0 0.0
        %336 = vmatpush1.msra.mxu0 0.0
        %337 = vmatprep.subr.mxu0 0.0
        %338 = vmatpush1.msra.mxu0 0.0
        %339 = vmatprep.subr.mxu0 0.0
        %340 = vmatpush1.msra.mxu0 0.0
        %341 = vmatprep.subr.mxu0 0.0
        %342 = vmatpush1.msra.mxu0 0.0
        %343 = vmatprep.subr.mxu0 0.0
        %344 = vmatpush1.msra.mxu0 0.0
        %345 = vmatprep.subr.mxu0 0.0
        %346 = vmatpush1.msra.mxu0 0.0
        %347 = vmatprep.subr.mxu0 0.0
        %348 = vmatpush1.msra.mxu0 0.0
        %349 = vmatprep.subr.mxu0 0.0
        %350 = vmatpush1.msra.mxu0 0.0
        %351 = vmatprep.subr.mxu0 0.0
        %352 = vmatpush1.msra.mxu0 0.0
        %353 = vmatprep.subr.mxu0 0.0
        %354 = vmatpush1.msra.mxu0 0.0
        %355 = vmatprep.subr.mxu0 0.0
        %356 = vmatpush1.msra.mxu0 0.0
        %357 = vmatprep.subr.mxu0 0.0
        %358 = vmatpush1.msra.mxu0 0.0
        %359 = vmatprep.subr.mxu0 0.0
        %360 = vmatpush1.msra.mxu0 0.0
        %361 = vmatprep.subr.mxu0 0.0
        %362 = vmatpush1.msra.mxu0 0.0
        %363 = vmatprep.subr.mxu0 0.0
        %364 = vmatpush1.msra.mxu0 0.0
        %365 = vmatprep.subr.mxu0 0.0
        %366 = vmatpush1.msra.mxu0 0.0
        %367 = vmatprep.subr.mxu0 0.0
        %368 = vmatpush1.msra.mxu0 0.0
        %369 = vmatprep.subr.mxu0 0.0
        %370 = vmatpush1.msra.mxu0 0.0
        %371 = vmatprep.mubr.f32.mxu0 0.0
        %372 = vmatmul.mubr.f32.gmra.mrb[0].mxu0 %v305
        %v373 = vpop.f32.mrb[0].mxu0
        %v374 = vadd.f32 %v301, %v373
        %v375 = vpop.f32.mrb[0].mxu0
        %376 = vdwg.mxu0
        %377 = vst [vmem:[%s200] sm:$0xff] %v374
        %s378 = sand.u32 %s110, 1
        %s379 = scalar_lea.sflag [#allocation6], %s378
        %s380 = sand.u32 %s110, 1
        %s381 = smul.addr %s380, 8
        %s382 = scalar_lea.vmem [#allocation7], %s381
        // Predicated region
        $region37: #{tpu_custom_call.1} parent=31 // pred_check
          %p383 = pneg %p120
        $region38: #{tpu_custom_call.1} parent=31 // pred_check_branch
          %385 = sbr.rel (%p383) target = $region40
        $region39: #{tpu_custom_call.1} parent=31 // pred_region
          %s387 = ssub.s32 128, 128
          %388 = vsyncadd %s379, %s387
          %s389 = smul.addr %s24, 2
          %s390 = sadd.s32 %s25, %s389
          %s391 = smul.addr %s390, 128
          %s392 = scalar_lea.hbm %s3, %s391
          %s394 = sshll.u32 %s382, 4
          %s395 = int_to_ptr.vmem [resolvable:$true] %s394
          %397 = dma.vmem_to_hbm [thread:$0]  %s395, 128, %s392, %s379
        $region40: #{tpu_custom_call.1} parent=31 // pred_fallthru
          _
      $region32: #{tpu_custom_call.1} parent=5 // pred_fallthru
        _
      %p398 = scmp.le.s32.totalorder 2, %s15
      // Predicated region
      $region41: #{tpu_custom_call.1} parent=5 // pred_check
        %p399 = pneg %p398
      $region42: #{tpu_custom_call.1} parent=5 // pred_check_branch
        %401 = sbr.rel (%p399) target = $region44
      $region43: #{tpu_custom_call.1} parent=5 // pred_region
        %s402 = ssub.s32 %s15, 2
        // Predicated region
        $region45: #{tpu_custom_call.1} parent=43 // pred_check
          %p403 = pneg %p126
        $region46: #{tpu_custom_call.1} parent=43 // pred_check_branch
          %405 = sbr.rel (%p403) target = $region48
        $region47: #{tpu_custom_call.1} parent=43 // pred_region
          %s406 = sand.u32 %s111, 1
          %s407 = scalar_lea.sflag [#allocation6], %s406
          %s408 = sand.u32 %s111, 1
          %s409 = smul.addr %s408, 8
          %s410 = scalar_lea.vmem [#allocation7], %s409
          %411 = dma.done %s407, 128
        $region48: #{tpu_custom_call.1} parent=43 // pred_fallthru
          _
      $region44: #{tpu_custom_call.1} parent=5 // pred_fallthru
        _
    $region6: #{tpu_custom_call.1} parent=1 // loop_footer
      %s19 = sadd.s32 1, %s15
    $region7: #{tpu_custom_call.1} parent=1 // loop_footer_branch
      %14 = sbr.rel target = $region3
    $region8: #{tpu_custom_call.1} parent=1 // loop_exit
      _
    %412 = vsyncpa [#allocation5], 1
    %s413 = scalar_lea.sflag [#allocation5], 1
    %414 = vsyncpa %s413, 1
    %415 = vsyncpa [#allocation6], 1
    %s416 = scalar_lea.sflag [#allocation6], 1
    %417 = vsyncpa %s416, 1

</llo_original>
